<compile_context>
chip_gen: v5e
topology: v5e:2x2
jax: 0.10.0
libtpu: 0.0.40
codegen_flags: <defaults>
</compile_context>

<pallas_src>
import functools

import jax
import jax.numpy as jnp
from jax.experimental import pallas as pl
from jax.experimental.pallas import tpu as pltpu

H1 = 256              # first hidden width  (nn.Linear(insize, 256))
H2 = 128              # second hidden width (nn.Linear(256, 128))
ROW_ALIGN = 256       # batch-tile granularity (MXU-height friendly, multiple of 8)
DEFAULT_BATCH_TILE = 4096


def _round_up(n, m):
    return (n + m - 1) // m * m


def mlp_kernel(x_ref, w1_ref, b1_ref, w2_ref, b2_ref, o_ref):
    # Cast the unpadded f32 x tile to bf16 on the VPU (HBM read stays 4 B/elem f32,
    # no extra XLA pass / padded copy in the wrapper).
    x = x_ref[...].astype(w1_ref.dtype)
    # Layer 1: (bt, insize) @ (insize, 256) on the MXU, f32 accumulate.
    h = jnp.dot(x, w1_ref[...], preferred_element_type=jnp.float32)
    h = jnp.maximum(h + b1_ref[...], 0.0)
    # Layer 2: bf16 activations again, f32 accumulate.
    o = jnp.dot(h.astype(w2_ref.dtype), w2_ref[...],
                preferred_element_type=jnp.float32)
    o = jnp.maximum(o + b2_ref[...], 0.0)
    o_ref[...] = o.astype(o_ref.dtype)


def _build_call(batch_tile, insize, n_tiles, x_dtype, out_dtype, compute_dtype):
    in_specs = [
        pl.BlockSpec((batch_tile, insize), lambda i: (i, 0)),   # x tile (unpadded)
        pl.BlockSpec((insize, H1), lambda i: (0, 0)),           # W1 (grid-invariant)
        pl.BlockSpec((1, H1), lambda i: (0, 0)),                # b1
        pl.BlockSpec((H1, H2), lambda i: (0, 0)),               # W2
        pl.BlockSpec((1, H2), lambda i: (0, 0)),                # b2
    ]
    out_specs = pl.BlockSpec((batch_tile, H2), lambda i: (i, 0))

    b_pad = batch_tile * n_tiles
    c_item = jnp.dtype(compute_dtype).itemsize
    bytes_accessed = (
        b_pad * insize * jnp.dtype(x_dtype).itemsize            # x (unpadded, f32)
        + (insize * H1 + H1 * H2) * c_item                      # W1, W2 (bf16)
        + (H1 + H2) * 4                                         # biases (f32)
        + b_pad * H2 * jnp.dtype(out_dtype).itemsize            # output (bf16)
    )
    cost = pl.CostEstimate(
        flops=2 * b_pad * (insize * H1 + H1 * H2),
        transcendentals=0,
        bytes_accessed=bytes_accessed,
    )

    return pl.pallas_call(
        mlp_kernel,
        out_shape=jax.ShapeDtypeStruct((b_pad, H2), out_dtype),
        grid_spec=pltpu.PrefetchScalarGridSpec(
            num_scalar_prefetch=0,
            grid=(n_tiles,),
            in_specs=in_specs,
            out_specs=out_specs,
        ),
        # Batch axis is embarrassingly parallel: megacore / multi-TC chips may shard
        # it.  (On v7x, pltpu.CORE_PARALLEL on this axis is a possible further win if
        # plain "parallel" does not split across the two TensorCores.)
        compiler_params=pltpu.CompilerParams(
            dimension_semantics=("parallel",),
        ),
        cost_estimate=cost,
    )


@functools.partial(jax.jit, static_argnames=("batch_tile", "compute_dtype", "out_dtype"))
def mlp_forward(x, w1, b1, w2, b2, *, batch_tile=DEFAULT_BATCH_TILE,
                compute_dtype=jnp.bfloat16, out_dtype=jnp.bfloat16):
    B, insize = x.shape
    assert w1.shape == (insize, H1) and w2.shape == (H1, H2)

    # Batch tile: multiple of 256, clamped for small batches so tiny demos don't pad
    # all the way to 4096 rows.
    bt = min(_round_up(batch_tile, ROW_ALIGN), _round_up(max(B, 1), ROW_ALIGN))
    b_pad = _round_up(B, bt)
    n_tiles = b_pad // bt

    # Only pad when the batch is ragged; tile-aligned batches pass through untouched
    # (no extra HBM read+write of the whole input).
    # TODO(synk): for very large ragged batches, mask the tail tile via a
    # scalar-prefetched row count instead of materializing a padded copy.
    x_in = x if b_pad == B else jnp.pad(x, ((0, b_pad - B), (0, 0)))

    # Weights are tiny (~160 KiB); casting them to bf16 in the wrapper is negligible.
    w1_c = w1.astype(compute_dtype)
    w2_c = w2.astype(compute_dtype)
    b1_c = b1.reshape(1, H1).astype(jnp.float32)
    b2_c = b2.reshape(1, H2).astype(jnp.float32)

    call = _build_call(bt, insize, n_tiles, x.dtype, out_dtype, compute_dtype)
    out = call(x_in, w1_c, b1_c, w2_c, b2_c)
    return out[:B]


def init_params(key, insize):
    # Deterministic synthetic init (PyTorch-style uniform(-1/sqrt(fan_in), ...)).
    k1, k2, k3, k4 = jax.random.split(key, 4)
    lim1 = 1.0 / jnp.sqrt(insize)
    lim2 = 1.0 / jnp.sqrt(H1)
    w1 = jax.random.uniform(k1, (insize, H1), jnp.float32, -lim1, lim1)
    b1 = jax.random.uniform(k2, (1, H1), jnp.float32, -lim1, lim1)
    w2 = jax.random.uniform(k3, (H1, H2), jnp.float32, -lim2, lim2)
    b2 = jax.random.uniform(k4, (1, H2), jnp.float32, -lim2, lim2)
    return w1, b1, w2, b2


def mlp_reference_bf16(x, w1, b1, w2, b2, out_dtype=jnp.bfloat16):
    # Pure-JAX reference mirroring the kernel's bf16-compute / f32-accumulate path.
    f32 = jnp.float32
    xb = x.astype(jnp.bfloat16).astype(f32)
    w1b = w1.astype(jnp.bfloat16).astype(f32)
    w2b = w2.astype(jnp.bfloat16).astype(f32)
    h = jnp.maximum(xb @ w1b + b1.reshape(1, H1), 0.0)
    h = h.astype(jnp.bfloat16).astype(f32)
    o = jnp.maximum(h @ w2b + b2.reshape(1, H2), 0.0)
    return o.astype(out_dtype)


if __name__ == "__main__":
    key = jax.random.PRNGKey(0)
    kx, kp, kx2 = jax.random.split(key, 3)

    B, insize = 8, 32
    x = jax.random.normal(kx, (B, insize), jnp.float32)
    w1, b1, w2, b2 = init_params(kp, insize)

    out = jax.block_until_ready(mlp_forward(x, w1, b1, w2, b2))
    assert out.shape == (B, H2)
    assert out.dtype == jnp.bfloat16

    # Exact-path reference (same bf16 casts, f32 accumulation, bf16 output).
    ref = mlp_reference_bf16(x, w1, b1, w2, b2)
    assert jnp.allclose(out.astype(jnp.float32), ref.astype(jnp.float32),
                        atol=2e-2, rtol=2e-2)

    # Loose semantic check against the full-f32 PyTorch math.
    ref_f32 = jnp.maximum(jnp.maximum(x @ w1 + b1, 0.0) @ w2 + b2, 0.0)
    assert jnp.allclose(out.astype(jnp.float32), ref_f32, atol=1e-1, rtol=1e-1)

    # Ragged batch (not a multiple of the batch tile) exercises the pad + slice path.
    B2 = 200
    x2 = jax.random.normal(kx2, (B2, insize), jnp.float32)
    out2 = jax.block_until_ready(mlp_forward(x2, w1, b1, w2, b2))
    assert out2.shape == (B2, H2)
    ref2 = mlp_reference_bf16(x2, w1, b1, w2, b2)
    assert jnp.allclose(out2.astype(jnp.float32), ref2.astype(jnp.float32),
                        atol=2e-2, rtol=2e-2)

    print("KERNEL_OK")
</pallas_src>

<mosaic_0001>
module attributes {stable_mosaic.version = 11 : i64} {
  func.func @mlp_kernel(%arg0: i32, %arg1: memref<256x32xf32, #tpu.memory_space<vmem>>, %arg2: memref<32x256xbf16, #tpu.memory_space<vmem>>, %arg3: memref<1x256xf32, #tpu.memory_space<vmem>>, %arg4: memref<256x128xbf16, #tpu.memory_space<vmem>>, %arg5: memref<1x128xf32, #tpu.memory_space<vmem>>, %arg6: memref<256x128xbf16, #tpu.memory_space<vmem>>) attributes {dimension_semantics = [#tpu.dimension_semantics<parallel>], iteration_bounds = array<i64: 1>, scalar_prefetch = 0 : i64, scratch_operands = 0 : i64, tpu.core_type = #tpu.core_type<tc>, window_params = [{transform_indices = @transform_0, window_bounds = array<i64: 256, 32>}, {pipeline_mode = #tpu.pipeline_mode<synchronous>, transform_indices = @transform_1, window_bounds = array<i64: 32, 256>}, {pipeline_mode = #tpu.pipeline_mode<synchronous>, transform_indices = @transform_2, window_bounds = array<i64: 1, 256>}, {pipeline_mode = #tpu.pipeline_mode<synchronous>, transform_indices = @transform_3, window_bounds = array<i64: 256, 128>}, {pipeline_mode = #tpu.pipeline_mode<synchronous>, transform_indices = @transform_4, window_bounds = array<i64: 1, 128>}, {transform_indices = @transform_5, window_bounds = array<i64: 256, 128>}]} {
    %c0 = arith.constant 0 : index
    %c0_0 = arith.constant 0 : index
    %0 = vector.load %arg1[%c0, %c0_0] : memref<256x32xf32, #tpu.memory_space<vmem>>, vector<256x32xf32>
    %1 = arith.truncf %0 : vector<256x32xf32> to vector<256x32xbf16>
    %c0_1 = arith.constant 0 : index
    %c0_2 = arith.constant 0 : index
    %2 = vector.load %arg2[%c0_1, %c0_2] : memref<32x256xbf16, #tpu.memory_space<vmem>>, vector<32x256xbf16>
    %cst = arith.constant dense<0.000000e+00> : vector<256x256xf32>
    %3 = tpu.matmul %1, %2, %cst {dimension_numbers = #tpu.dot_dimension_numbers<[1], [0], [0], [1], [0, 0, 1, 1], [], []>} : vector<256x32xbf16>, vector<32x256xbf16>, vector<256x256xf32> -> vector<256x256xf32>
    %c0_3 = arith.constant 0 : index
    %c0_4 = arith.constant 0 : index
    %4 = vector.load %arg3[%c0_3, %c0_4] : memref<1x256xf32, #tpu.memory_space<vmem>>, vector<1x256xf32>
    %5 = vector.broadcast %4 : vector<1x256xf32> to vector<256x256xf32>
    %6 = arith.addf %3, %5 : vector<256x256xf32>
    %cst_5 = arith.constant 0.000000e+00 : f32
    %7 = vector.broadcast %cst_5 : f32 to vector<256x256xf32>
    %8 = arith.maximumf %6, %7 : vector<256x256xf32>
    %9 = arith.truncf %8 : vector<256x256xf32> to vector<256x256xbf16>
    %c0_6 = arith.constant 0 : index
    %c0_7 = arith.constant 0 : index
    %10 = vector.load %arg4[%c0_6, %c0_7] : memref<256x128xbf16, #tpu.memory_space<vmem>>, vector<256x128xbf16>
    %cst_8 = arith.constant dense<0.000000e+00> : vector<256x128xf32>
    %11 = tpu.matmul %9, %10, %cst_8 {dimension_numbers = #tpu.dot_dimension_numbers<[1], [0], [0], [1], [0, 0, 1, 1], [], []>} : vector<256x256xbf16>, vector<256x128xbf16>, vector<256x128xf32> -> vector<256x128xf32>
    %c0_9 = arith.constant 0 : index
    %c0_10 = arith.constant 0 : index
    %12 = vector.load %arg5[%c0_9, %c0_10] : memref<1x128xf32, #tpu.memory_space<vmem>>, vector<1x128xf32>
    %13 = vector.broadcast %12 : vector<1x128xf32> to vector<256x128xf32>
    %14 = arith.addf %11, %13 : vector<256x128xf32>
    %cst_11 = arith.constant 0.000000e+00 : f32
    %15 = vector.broadcast %cst_11 : f32 to vector<256x128xf32>
    %16 = arith.maximumf %14, %15 : vector<256x128xf32>
    %17 = arith.truncf %16 : vector<256x128xf32> to vector<256x128xbf16>
    %c0_12 = arith.constant 0 : index
    %c0_13 = arith.constant 0 : index
    %18 = vector.load %arg6[%c0_12, %c0_13] : memref<256x128xbf16, #tpu.memory_space<vmem>>, vector<256x128xbf16>
    tpu.vector_store %arg6[%c0_12, %c0_13], %17 {strides = array<i32>} : memref<256x128xbf16, #tpu.memory_space<vmem>>, vector<256x128xbf16>,
    return
  }
  func.func @transform_0(%arg0: i32) -> (i32, i32) {
    %c0_i32 = arith.constant 0 : i32
    %c0_i32_0 = arith.constant 0 : i32
    return %arg0, %c0_i32 : i32, i32
  }
  func.func @transform_1(%arg0: i32) -> (i32, i32) {
    %c0_i32 = arith.constant 0 : i32
    %c0_i32_0 = arith.constant 0 : i32
    %c0_i32_1 = arith.constant 0 : i32
    return %c0_i32, %c0_i32_0 : i32, i32
  }
  func.func @transform_2(%arg0: i32) -> (i32, i32) {
    %c0_i32 = arith.constant 0 : i32
    %c0_i32_0 = arith.constant 0 : i32
    %c0_i32_1 = arith.constant 0 : i32
    return %c0_i32, %c0_i32_0 : i32, i32
  }
  func.func @transform_3(%arg0: i32) -> (i32, i32) {
    %c0_i32 = arith.constant 0 : i32
    %c0_i32_0 = arith.constant 0 : i32
    %c0_i32_1 = arith.constant 0 : i32
    return %c0_i32, %c0_i32_0 : i32, i32
  }
  func.func @transform_4(%arg0: i32) -> (i32, i32) {
    %c0_i32 = arith.constant 0 : i32
    %c0_i32_0 = arith.constant 0 : i32
    %c0_i32_1 = arith.constant 0 : i32
    return %c0_i32, %c0_i32_0 : i32, i32
  }
  func.func @transform_5(%arg0: i32) -> (i32, i32) {
    %c0_i32 = arith.constant 0 : i32
    %c0_i32_0 = arith.constant 0 : i32
    return %arg0, %c0_i32 : i32, i32
  }
}

</mosaic_0001>

<llo_original>
// kernel: mlp_forward.1
$region0: #{mlp_forward.1}
  #allocation0 [shape = 'u32[]', space=smem, size = 0x4, offset = 0x4, fixed_abs, tag = 'smem constant byte address 0x4 - core index']
  #allocation1 [shape = 'u32[72,128]{1,0:T(1,128)}', space=vmem, size = 0x9000, scoped, tag = 'internal scratch']
  %s0 = inlined_call_operand.vmem [shape: f32[256,32], index: 0, kind: input, shape index: {}]
  %s1 = inlined_call_operand.vmem [shape: bf16[32,256], index: 1, kind: input, shape index: {}]
  %s2 = inlined_call_operand.vmem [shape: f32[1,256], index: 2, kind: input, shape index: {}]
  %s3 = inlined_call_operand.vmem [shape: bf16[256,128], index: 3, kind: input, shape index: {}]
  %s4 = inlined_call_operand.vmem [shape: f32[1,128], index: 4, kind: input, shape index: {}]
  %s5 = inlined_call_operand.vmem [shape: bf16[256,128], index: 5, kind: output, shape index: {}]
  %s6 = sld [smem:[#allocation0]]
  $region30: #{mlp_forward.1} parent=0
    _
  %s8 = ssub.s32 1, %s6
  %s9 = scalar_select 0, %s8, %s6
  // Predicated region
  $region2: #{mlp_forward.1} parent=0 // pred_check
    _
  $region3: #{mlp_forward.1} parent=0 // pred_check_branch
    %11 = sbr.rel (0) target = $region5
  $region4: #{mlp_forward.1} parent=0 // pred_region
    _
  $region5: #{mlp_forward.1} parent=0 // pred_fallthru
    _
  // Predicated region
  $region6: #{mlp_forward.1} parent=0 // pred_check
    _
  $region7: #{mlp_forward.1} parent=0 // pred_check_branch
    %13 = sbr.rel (0) target = $region9
  $region8: #{mlp_forward.1} parent=0 // pred_region
    _
  $region9: #{mlp_forward.1} parent=0 // pred_fallthru
    _
  // Predicated region
  $region10: #{mlp_forward.1} parent=0 // pred_check
    _
  $region11: #{mlp_forward.1} parent=0 // pred_check_branch
    %15 = sbr.rel (0) target = $region13
  $region12: #{mlp_forward.1} parent=0 // pred_region
    _
  $region13: #{mlp_forward.1} parent=0 // pred_fallthru
    _
  // Predicated region
  $region14: #{mlp_forward.1} parent=0 // pred_check
    _
  $region15: #{mlp_forward.1} parent=0 // pred_check_branch
    %17 = sbr.rel (0) target = $region17
  $region16: #{mlp_forward.1} parent=0 // pred_region
    _
  $region17: #{mlp_forward.1} parent=0 // pred_fallthru
    _
  // Predicated region
  $region18: #{mlp_forward.1} parent=0 // pred_check
    _
  $region19: #{mlp_forward.1} parent=0 // pred_check_branch
    %19 = sbr.rel (0) target = $region21
  $region20: #{mlp_forward.1} parent=0 // pred_region
    _
  $region21: #{mlp_forward.1} parent=0 // pred_fallthru
    _
  %v21 = vld [vmem:[%s0] sm:$0xff]
  %v22 = vld [vmem:[%s0 + $0x8] sm:$0xff]
  %v23 = vld [vmem:[%s0 + $0x10] sm:$0xff]
  %v24 = vld [vmem:[%s0 + $0x18] sm:$0xff]
  %v25 = vld [vmem:[%s0 + $0x20] sm:$0xff]
  %v26 = vld [vmem:[%s0 + $0x28] sm:$0xff]
  %v27 = vld [vmem:[%s0 + $0x30] sm:$0xff]
  %v28 = vld [vmem:[%s0 + $0x38] sm:$0xff]
  %v29 = vld [vmem:[%s0 + $0x40] sm:$0xff]
  %v30 = vld [vmem:[%s0 + $0x48] sm:$0xff]
  %v31 = vld [vmem:[%s0 + $0x50] sm:$0xff]
  %v32 = vld [vmem:[%s0 + $0x58] sm:$0xff]
  %v33 = vld [vmem:[%s0 + $0x60] sm:$0xff]
  %v34 = vld [vmem:[%s0 + $0x68] sm:$0xff]
  %v35 = vld [vmem:[%s0 + $0x70] sm:$0xff]
  %v36 = vld [vmem:[%s0 + $0x78] sm:$0xff]
  %v37 = vld [vmem:[%s0 + $0x80] sm:$0xff]
  %v38 = vld [vmem:[%s0 + $0x88] sm:$0xff]
  %v39 = vld [vmem:[%s0 + $0x90] sm:$0xff]
  %v40 = vld [vmem:[%s0 + $0x98] sm:$0xff]
  %v41 = vld [vmem:[%s0 + $0xa0] sm:$0xff]
  %v42 = vld [vmem:[%s0 + $0xa8] sm:$0xff]
  %v43 = vld [vmem:[%s0 + $0xb0] sm:$0xff]
  %v44 = vld [vmem:[%s0 + $0xb8] sm:$0xff]
  %v45 = vld [vmem:[%s0 + $0xc0] sm:$0xff]
  %v46 = vld [vmem:[%s0 + $0xc8] sm:$0xff]
  %v47 = vld [vmem:[%s0 + $0xd0] sm:$0xff]
  %v48 = vld [vmem:[%s0 + $0xd8] sm:$0xff]
  %v49 = vld [vmem:[%s0 + $0xe0] sm:$0xff]
  %v50 = vld [vmem:[%s0 + $0xe8] sm:$0xff]
  %v51 = vld [vmem:[%s0 + $0xf0] sm:$0xff]
  %v52 = vld [vmem:[%s0 + $0xf8] sm:$0xff]
  %v53 = vpack.c.bf16 %v22, %v21
  %v54 = vpack.c.bf16 %v24, %v23
  %v55 = vpack.c.bf16 %v26, %v25
  %v56 = vpack.c.bf16 %v28, %v27
  %v57 = vpack.c.bf16 %v30, %v29
  %v58 = vpack.c.bf16 %v32, %v31
  %v59 = vpack.c.bf16 %v34, %v33
  %v60 = vpack.c.bf16 %v36, %v35
  %v61 = vpack.c.bf16 %v38, %v37
  %v62 = vpack.c.bf16 %v40, %v39
  %v63 = vpack.c.bf16 %v42, %v41
  %v64 = vpack.c.bf16 %v44, %v43
  %v65 = vpack.c.bf16 %v46, %v45
  %v66 = vpack.c.bf16 %v48, %v47
  %v67 = vpack.c.bf16 %v50, %v49
  %v68 = vpack.c.bf16 %v52, %v51
  %v69 = vld [vmem:[%s1] sm:$0xff]
  %v70 = vld [vmem:[%s1 + $0x8] sm:$0xff]
  %v71 = vld [vmem:[%s1 + $0x10] sm:$0xff]
  %v72 = vld [vmem:[%s1 + $0x18] sm:$0xff]
  %v73 = vld [vmem:[%s2] sm:$0x3]
  %v75 = vperm.slane %v73, 0
  %v76 = vperm.slane %v73, 1
  %v83 = vunpack.c.l.b16 %v69
  %v84 = vunpack.c.h.b16 %v69
  %v85 = vunpack.c.l.b16 %v70
  %v86 = vunpack.c.h.b16 %v70
  %v87 = vunpack.c.l.b16 %v71
  %v88 = vunpack.c.h.b16 %v71
  %v89 = vunpack.c.l.b16 %v72
  %v90 = vunpack.c.h.b16 %v72
  %v91 = vpack.c.b16 %v85, %v83
  %v92 = vpack.c.b16 %v86, %v84
  %v93 = vpack.c.b16 %v89, %v87
  %v94 = vpack.c.b16 %v90, %v88
  %vm99 = vcmask 261120
  %v101 = vsel %vm99, %v53, 0
  %v104 = vsel %vm99, %v54, 0
  %v107 = vsel %vm99, %v55, 0
  %v110 = vsel %vm99, %v56, 0
  %v113 = vsel %vm99, %v57, 0
  %v116 = vsel %vm99, %v58, 0
  %v119 = vsel %vm99, %v59, 0
  %v122 = vsel %vm99, %v60, 0
  %v125 = vsel %vm99, %v61, 0
  %v128 = vsel %vm99, %v62, 0
  %v131 = vsel %vm99, %v63, 0
  %v134 = vsel %vm99, %v64, 0
  %v137 = vsel %vm99, %v65, 0
  %v140 = vsel %vm99, %v66, 0
  %v143 = vsel %vm99, %v67, 0
  %v146 = vsel %vm99, %v68, 0
  %148 = vmatpush.bf16.msra.mxu0 0
  %149 = vmatpush.bf16.msra.mxu0 0
  %150 = vmatpush.bf16.msra.mxu0 0
  %151 = vmatpush.bf16.msra.mxu0 0
  %152 = vmatpush.bf16.msra.mxu0 0
  %153 = vmatpush.bf16.msra.mxu0 0
  %154 = vmatpush.bf16.msra.mxu0 %v93
  %155 = vmatpush.bf16.msra.mxu0 %v91
  %156 = vmatmul.bf16.gmra.mxu0 %v101
  %v157 = vpop.f32.mrf.mxu0
  %v158 = vadd.f32 %v75, %v157
  %v159 = vpop.f32.mrf.mxu0
  %v160 = vadd.f32 %v75, %v159
  %161 = vmatmul.bf16.gmra.mxu0 %v104
  %v162 = vpop.f32.mrf.mxu0
  %v163 = vadd.f32 %v75, %v162
  %v164 = vpop.f32.mrf.mxu0
  %v165 = vadd.f32 %v75, %v164
  %166 = vmatmul.bf16.gmra.mxu0 %v107
  %v167 = vpop.f32.mrf.mxu0
  %v168 = vadd.f32 %v75, %v167
  %v169 = vpop.f32.mrf.mxu0
  %v170 = vadd.f32 %v75, %v169
  %171 = vmatmul.bf16.gmra.mxu0 %v110
  %v172 = vpop.f32.mrf.mxu0
  %v173 = vadd.f32 %v75, %v172
  %v174 = vpop.f32.mrf.mxu0
  %v175 = vadd.f32 %v75, %v174
  %176 = vmatmul.bf16.gmra.mxu0 %v113
  %v177 = vpop.f32.mrf.mxu0
  %v178 = vadd.f32 %v75, %v177
  %v179 = vpop.f32.mrf.mxu0
  %v180 = vadd.f32 %v75, %v179
  %181 = vmatmul.bf16.gmra.mxu0 %v116
  %v182 = vpop.f32.mrf.mxu0
  %v183 = vadd.f32 %v75, %v182
  %v184 = vpop.f32.mrf.mxu0
  %v185 = vadd.f32 %v75, %v184
  %186 = vmatmul.bf16.gmra.mxu0 %v119
  %v187 = vpop.f32.mrf.mxu0
  %v188 = vadd.f32 %v75, %v187
  %v189 = vpop.f32.mrf.mxu0
  %v190 = vadd.f32 %v75, %v189
  %191 = vmatmul.bf16.gmra.mxu0 %v122
  %v192 = vpop.f32.mrf.mxu0
  %v193 = vadd.f32 %v75, %v192
  %v194 = vpop.f32.mrf.mxu0
  %v195 = vadd.f32 %v75, %v194
  %196 = vmatmul.bf16.gmra.mxu0 %v125
  %v197 = vpop.f32.mrf.mxu0
  %v198 = vadd.f32 %v75, %v197
  %v199 = vpop.f32.mrf.mxu0
  %v200 = vadd.f32 %v75, %v199
  %201 = vmatmul.bf16.gmra.mxu0 %v128
  %v202 = vpop.f32.mrf.mxu0
  %v203 = vadd.f32 %v75, %v202
  %v204 = vpop.f32.mrf.mxu0
  %v205 = vadd.f32 %v75, %v204
  %206 = vmatmul.bf16.gmra.mxu0 %v131
  %v207 = vpop.f32.mrf.mxu0
  %v208 = vadd.f32 %v75, %v207
  %v209 = vpop.f32.mrf.mxu0
  %v210 = vadd.f32 %v75, %v209
  %211 = vmatmul.bf16.gmra.mxu0 %v134
  %v212 = vpop.f32.mrf.mxu0
  %v213 = vadd.f32 %v75, %v212
  %v214 = vpop.f32.mrf.mxu0
  %v215 = vadd.f32 %v75, %v214
  %216 = vmatmul.bf16.gmra.mxu0 %v137
  %v217 = vpop.f32.mrf.mxu0
  %v218 = vadd.f32 %v75, %v217
  %v219 = vpop.f32.mrf.mxu0
  %v220 = vadd.f32 %v75, %v219
  %221 = vmatmul.bf16.gmra.mxu0 %v140
  %v222 = vpop.f32.mrf.mxu0
  %v223 = vadd.f32 %v75, %v222
  %v224 = vpop.f32.mrf.mxu0
  %v225 = vadd.f32 %v75, %v224
  %226 = vmatmul.bf16.gmra.mxu0 %v143
  %v227 = vpop.f32.mrf.mxu0
  %v228 = vadd.f32 %v75, %v227
  %v229 = vpop.f32.mrf.mxu0
  %v230 = vadd.f32 %v75, %v229
  %231 = vmatmul.bf16.gmra.mxu0 %v146
  %v232 = vpop.f32.mrf.mxu0
  %v233 = vadd.f32 %v75, %v232
  %v234 = vpop.f32.mrf.mxu0
  %v235 = vadd.f32 %v75, %v234
  %236 = vdwg.mxu0
  %237 = vmatpush.bf16.msra.mxu0 0
  %238 = vmatpush.bf16.msra.mxu0 0
  %239 = vmatpush.bf16.msra.mxu0 0
  %240 = vmatpush.bf16.msra.mxu0 0
  %241 = vmatpush.bf16.msra.mxu0 0
  %242 = vmatpush.bf16.msra.mxu0 0
  %243 = vmatpush.bf16.msra.mxu0 %v94
  %244 = vmatpush.bf16.msra.mxu0 %v92
  %245 = vmatmul.bf16.gmra.mxu0 %v101
  %v246 = vpop.f32.mrf.mxu0
  %v247 = vadd.f32 %v76, %v246
  %v248 = vpop.f32.mrf.mxu0
  %v249 = vadd.f32 %v76, %v248
  %250 = vmatmul.bf16.gmra.mxu0 %v104
  %v251 = vpop.f32.mrf.mxu0
  %v252 = vadd.f32 %v76, %v251
  %v253 = vpop.f32.mrf.mxu0
  %v254 = vadd.f32 %v76, %v253
  %255 = vmatmul.bf16.gmra.mxu0 %v107
  %v256 = vpop.f32.mrf.mxu0
  %v257 = vadd.f32 %v76, %v256
  %v258 = vpop.f32.mrf.mxu0
  %v259 = vadd.f32 %v76, %v258
  %260 = vmatmul.bf16.gmra.mxu0 %v110
  %v261 = vpop.f32.mrf.mxu0
  %v262 = vadd.f32 %v76, %v261
  %v263 = vpop.f32.mrf.mxu0
  %v264 = vadd.f32 %v76, %v263
  %265 = vmatmul.bf16.gmra.mxu0 %v113
  %v266 = vpop.f32.mrf.mxu0
  %v267 = vadd.f32 %v76, %v266
  %v268 = vpop.f32.mrf.mxu0
  %v269 = vadd.f32 %v76, %v268
  %270 = vmatmul.bf16.gmra.mxu0 %v116
  %v271 = vpop.f32.mrf.mxu0
  %v272 = vadd.f32 %v76, %v271
  %v273 = vpop.f32.mrf.mxu0
  %v274 = vadd.f32 %v76, %v273
  %275 = vmatmul.bf16.gmra.mxu0 %v119
  %v276 = vpop.f32.mrf.mxu0
  %v277 = vadd.f32 %v76, %v276
  %v278 = vpop.f32.mrf.mxu0
  %v279 = vadd.f32 %v76, %v278
  %280 = vmatmul.bf16.gmra.mxu0 %v122
  %v281 = vpop.f32.mrf.mxu0
  %v282 = vadd.f32 %v76, %v281
  %v283 = vpop.f32.mrf.mxu0
  %v284 = vadd.f32 %v76, %v283
  %285 = vmatmul.bf16.gmra.mxu0 %v125
  %v286 = vpop.f32.mrf.mxu0
  %v287 = vadd.f32 %v76, %v286
  %v288 = vpop.f32.mrf.mxu0
  %v289 = vadd.f32 %v76, %v288
  %290 = vmatmul.bf16.gmra.mxu0 %v128
  %v291 = vpop.f32.mrf.mxu0
  %v292 = vadd.f32 %v76, %v291
  %v293 = vpop.f32.mrf.mxu0
  %v294 = vadd.f32 %v76, %v293
  %295 = vmatmul.bf16.gmra.mxu0 %v131
  %v296 = vpop.f32.mrf.mxu0
  %v297 = vadd.f32 %v76, %v296
  %v298 = vpop.f32.mrf.mxu0
  %v299 = vadd.f32 %v76, %v298
  %300 = vmatmul.bf16.gmra.mxu0 %v134
  %v301 = vpop.f32.mrf.mxu0
  %v302 = vadd.f32 %v76, %v301
  %v303 = vpop.f32.mrf.mxu0
  %v304 = vadd.f32 %v76, %v303
  %305 = vmatmul.bf16.gmra.mxu0 %v137
  %v306 = vpop.f32.mrf.mxu0
  %v307 = vadd.f32 %v76, %v306
  %v308 = vpop.f32.mrf.mxu0
  %v309 = vadd.f32 %v76, %v308
  %310 = vmatmul.bf16.gmra.mxu0 %v140
  %v311 = vpop.f32.mrf.mxu0
  %v312 = vadd.f32 %v76, %v311
  %v313 = vpop.f32.mrf.mxu0
  %v314 = vadd.f32 %v76, %v313
  %315 = vmatmul.bf16.gmra.mxu0 %v143
  %v316 = vpop.f32.mrf.mxu0
  %v317 = vadd.f32 %v76, %v316
  %v318 = vpop.f32.mrf.mxu0
  %v319 = vadd.f32 %v76, %v318
  %320 = vmatmul.bf16.gmra.mxu0 %v146
  %v321 = vpop.f32.mrf.mxu0
  %v322 = vadd.f32 %v76, %v321
  %v323 = vpop.f32.mrf.mxu0
  %v324 = vadd.f32 %v76, %v323
  %325 = vdwg.mxu0
  %v326 = vmax.f32 %v158, 0.0
  %v327 = vmax.f32 %v247, 0.0
  %v328 = vmax.f32 %v160, 0.0
  %v329 = vmax.f32 %v249, 0.0
  %v330 = vmax.f32 %v163, 0.0
  %v331 = vmax.f32 %v252, 0.0
  %v332 = vmax.f32 %v165, 0.0
  %v333 = vmax.f32 %v254, 0.0
  %v334 = vmax.f32 %v168, 0.0
  %v335 = vmax.f32 %v257, 0.0
  %v336 = vmax.f32 %v170, 0.0
  %v337 = vmax.f32 %v259, 0.0
  %v338 = vmax.f32 %v173, 0.0
  %v339 = vmax.f32 %v262, 0.0
  %v340 = vmax.f32 %v175, 0.0
  %v341 = vmax.f32 %v264, 0.0
  %v342 = vmax.f32 %v178, 0.0
  %v343 = vmax.f32 %v267, 0.0
  %v344 = vmax.f32 %v180, 0.0
  %v345 = vmax.f32 %v269, 0.0
  %v346 = vmax.f32 %v183, 0.0
  %v347 = vmax.f32 %v272, 0.0
  %v348 = vmax.f32 %v185, 0.0
  %v349 = vmax.f32 %v274, 0.0
  %v350 = vmax.f32 %v188, 0.0
  %v351 = vmax.f32 %v277, 0.0
  %v352 = vmax.f32 %v190, 0.0
  %v353 = vmax.f32 %v279, 0.0
  %v354 = vmax.f32 %v193, 0.0
  %v355 = vmax.f32 %v282, 0.0
  %v356 = vmax.f32 %v195, 0.0
  %v357 = vmax.f32 %v284, 0.0
  %v358 = vmax.f32 %v198, 0.0
  %v359 = vmax.f32 %v287, 0.0
  %v360 = vmax.f32 %v200, 0.0
  %v361 = vmax.f32 %v289, 0.0
  %v362 = vmax.f32 %v203, 0.0
  %v363 = vmax.f32 %v292, 0.0
  %v364 = vmax.f32 %v205, 0.0
  %v365 = vmax.f32 %v294, 0.0
  %v366 = vmax.f32 %v208, 0.0
  %v367 = vmax.f32 %v297, 0.0
  %v368 = vmax.f32 %v210, 0.0
  %v369 = vmax.f32 %v299, 0.0
  %v370 = vmax.f32 %v213, 0.0
  %v371 = vmax.f32 %v302, 0.0
  %v372 = vmax.f32 %v215, 0.0
  %v373 = vmax.f32 %v304, 0.0
  %v374 = vmax.f32 %v218, 0.0
  %v375 = vmax.f32 %v307, 0.0
  %v376 = vmax.f32 %v220, 0.0
  %v377 = vmax.f32 %v309, 0.0
  %v378 = vmax.f32 %v223, 0.0
  %v379 = vmax.f32 %v312, 0.0
  %v380 = vmax.f32 %v225, 0.0
  %v381 = vmax.f32 %v314, 0.0
  %v382 = vmax.f32 %v228, 0.0
  %v383 = vmax.f32 %v317, 0.0
  %v384 = vmax.f32 %v230, 0.0
  %v385 = vmax.f32 %v319, 0.0
  %v386 = vmax.f32 %v233, 0.0
  %v387 = vmax.f32 %v322, 0.0
  %v388 = vmax.f32 %v235, 0.0
  %v389 = vmax.f32 %v324, 0.0
  %v390 = vpack.c.bf16 %v328, %v326
  %v391 = vpack.c.bf16 %v329, %v327
  %v392 = vpack.c.bf16 %v332, %v330
  %v393 = vpack.c.bf16 %v333, %v331
  %v394 = vpack.c.bf16 %v336, %v334
  %v395 = vpack.c.bf16 %v337, %v335
  %v396 = vpack.c.bf16 %v340, %v338
  %v397 = vpack.c.bf16 %v341, %v339
  %v398 = vpack.c.bf16 %v344, %v342
  %v399 = vpack.c.bf16 %v345, %v343
  %v400 = vpack.c.bf16 %v348, %v346
  %v401 = vpack.c.bf16 %v349, %v347
  %v402 = vpack.c.bf16 %v352, %v350
  %v403 = vpack.c.bf16 %v353, %v351
  %v404 = vpack.c.bf16 %v356, %v354
  %v405 = vpack.c.bf16 %v357, %v355
  %v406 = vpack.c.bf16 %v360, %v358
  %v407 = vpack.c.bf16 %v361, %v359
  %v408 = vpack.c.bf16 %v364, %v362
  %v409 = vpack.c.bf16 %v365, %v363
  %v410 = vpack.c.bf16 %v368, %v366
  %v411 = vpack.c.bf16 %v369, %v367
  %v412 = vpack.c.bf16 %v372, %v370
  %v413 = vpack.c.bf16 %v373, %v371
  %v414 = vpack.c.bf16 %v376, %v374
  %v415 = vpack.c.bf16 %v377, %v375
  %v416 = vpack.c.bf16 %v380, %v378
  %v417 = vpack.c.bf16 %v381, %v379
  %v418 = vpack.c.bf16 %v384, %v382
  %v419 = vpack.c.bf16 %v385, %v383
  %v420 = vpack.c.bf16 %v388, %v386
  %v421 = vpack.c.bf16 %v389, %v387
  %v422 = vld [vmem:[%s3] sm:$0xf]
  %v423 = vld [vmem:[%s3 + $0x4] sm:$0xf]
  %v424 = vld [vmem:[%s3 + $0x8] sm:$0xf]
  %v425 = vld [vmem:[%s3 + $0xc] sm:$0xf]
  %v426 = vld [vmem:[%s3 + $0x10] sm:$0xf]
  %v427 = vld [vmem:[%s3 + $0x14] sm:$0xf]
  %v428 = vld [vmem:[%s3 + $0x18] sm:$0xf]
  %v429 = vld [vmem:[%s3 + $0x1c] sm:$0xf]
  %v430 = vld [vmem:[%s3 + $0x20] sm:$0xf]
  %v431 = vld [vmem:[%s3 + $0x24] sm:$0xf]
  %v432 = vld [vmem:[%s3 + $0x28] sm:$0xf]
  %v433 = vld [vmem:[%s3 + $0x2c] sm:$0xf]
  %v434 = vld [vmem:[%s3 + $0x30] sm:$0xf]
  %v435 = vld [vmem:[%s3 + $0x34] sm:$0xf]
  %v436 = vld [vmem:[%s3 + $0x38] sm:$0xf]
  %v437 = vld [vmem:[%s3 + $0x3c] sm:$0xf]
  %v438 = vld [vmem:[%s3 + $0x40] sm:$0xf]
  %v439 = vld [vmem:[%s3 + $0x44] sm:$0xf]
  %v440 = vld [vmem:[%s3 + $0x48] sm:$0xf]
  %v441 = vld [vmem:[%s3 + $0x4c] sm:$0xf]
  %v442 = vld [vmem:[%s3 + $0x50] sm:$0xf]
  %v443 = vld [vmem:[%s3 + $0x54] sm:$0xf]
  %v444 = vld [vmem:[%s3 + $0x58] sm:$0xf]
  %v445 = vld [vmem:[%s3 + $0x5c] sm:$0xf]
  %v446 = vld [vmem:[%s3 + $0x60] sm:$0xf]
  %v447 = vld [vmem:[%s3 + $0x64] sm:$0xf]
  %v448 = vld [vmem:[%s3 + $0x68] sm:$0xf]
  %v449 = vld [vmem:[%s3 + $0x6c] sm:$0xf]
  %v450 = vld [vmem:[%s3 + $0x70] sm:$0xf]
  %v451 = vld [vmem:[%s3 + $0x74] sm:$0xf]
  %v452 = vld [vmem:[%s3 + $0x78] sm:$0xf]
  %v453 = vld [vmem:[%s3 + $0x7c] sm:$0xf]
  %v454 = vld [vmem:[%s4] sm:$0x1]
  %v456 = vperm.slane %v454, 0
  %v490 = vunpack.c.l.b16 %v422
  %v491 = vunpack.c.l.b16 %v423
  %v492 = vunpack.c.l.b16 %v424
  %v493 = vunpack.c.l.b16 %v425
  %v494 = vunpack.c.l.b16 %v426
  %v495 = vunpack.c.l.b16 %v427
  %v496 = vunpack.c.l.b16 %v428
  %v497 = vunpack.c.l.b16 %v429
  %v498 = vunpack.c.l.b16 %v430
  %v499 = vunpack.c.l.b16 %v431
  %v500 = vunpack.c.l.b16 %v432
  %v501 = vunpack.c.l.b16 %v433
  %v502 = vunpack.c.l.b16 %v434
  %v503 = vunpack.c.l.b16 %v435
  %v504 = vunpack.c.l.b16 %v436
  %v505 = vunpack.c.l.b16 %v437
  %v506 = vunpack.c.l.b16 %v438
  %v507 = vunpack.c.l.b16 %v439
  %v508 = vunpack.c.l.b16 %v440
  %v509 = vunpack.c.l.b16 %v441
  %v510 = vunpack.c.l.b16 %v442
  %v511 = vunpack.c.l.b16 %v443
  %v512 = vunpack.c.l.b16 %v444
  %v513 = vunpack.c.l.b16 %v445
  %v514 = vunpack.c.l.b16 %v446
  %v515 = vunpack.c.l.b16 %v447
  %v516 = vunpack.c.l.b16 %v448
  %v517 = vunpack.c.l.b16 %v449
  %v518 = vunpack.c.l.b16 %v450
  %v519 = vunpack.c.l.b16 %v451
  %v520 = vunpack.c.l.b16 %v452
  %v521 = vunpack.c.l.b16 %v453
  %v522 = vpack.c.b16 %v491, %v490
  %v523 = vpack.c.b16 %v493, %v492
  %v524 = vpack.c.b16 %v495, %v494
  %v525 = vpack.c.b16 %v497, %v496
  %v526 = vpack.c.b16 %v499, %v498
  %v527 = vpack.c.b16 %v501, %v500
  %v528 = vpack.c.b16 %v503, %v502
  %v529 = vpack.c.b16 %v505, %v504
  %v530 = vpack.c.b16 %v507, %v506
  %v531 = vpack.c.b16 %v509, %v508
  %v532 = vpack.c.b16 %v511, %v510
  %v533 = vpack.c.b16 %v513, %v512
  %v534 = vpack.c.b16 %v515, %v514
  %v535 = vpack.c.b16 %v517, %v516
  %v536 = vpack.c.b16 %v519, %v518
  %v537 = vpack.c.b16 %v521, %v520
  %554 = vmatpush.bf16.msra.mxu0 %v529
  %555 = vmatpush.bf16.msra.mxu0 %v528
  %556 = vmatpush.bf16.msra.mxu0 %v527
  %557 = vmatpush.bf16.msra.mxu0 %v526
  %558 = vmatpush.bf16.msra.mxu0 %v525
  %559 = vmatpush.bf16.msra.mxu0 %v524
  %560 = vmatpush.bf16.msra.mxu0 %v523
  %561 = vmatpush.bf16.msra.mxu0 %v522
  %562 = vmatmul.bf16.gmra.mxu0 %v390
  %v563 = vpop.f32.mrf.mxu0
  %v564 = vadd.f32 %v456, %v563
  %v565 = vpop.f32.mrf.mxu0
  %v566 = vadd.f32 %v456, %v565
  %567 = vmatmul.bf16.gmra.mxu0 %v392
  %v568 = vpop.f32.mrf.mxu0
  %v569 = vadd.f32 %v456, %v568
  %v570 = vpop.f32.mrf.mxu0
  %v571 = vadd.f32 %v456, %v570
  %572 = vmatmul.bf16.gmra.mxu0 %v394
  %v573 = vpop.f32.mrf.mxu0
  %v574 = vadd.f32 %v456, %v573
  %v575 = vpop.f32.mrf.mxu0
  %v576 = vadd.f32 %v456, %v575
  %577 = vmatmul.bf16.gmra.mxu0 %v396
  %v578 = vpop.f32.mrf.mxu0
  %v579 = vadd.f32 %v456, %v578
  %v580 = vpop.f32.mrf.mxu0
  %v581 = vadd.f32 %v456, %v580
  %582 = vmatmul.bf16.gmra.mxu0 %v398
  %v583 = vpop.f32.mrf.mxu0
  %v584 = vadd.f32 %v456, %v583
  %v585 = vpop.f32.mrf.mxu0
  %v586 = vadd.f32 %v456, %v585
  %587 = vmatmul.bf16.gmra.mxu0 %v400
  %v588 = vpop.f32.mrf.mxu0
  %v589 = vadd.f32 %v456, %v588
  %v590 = vpop.f32.mrf.mxu0
  %v591 = vadd.f32 %v456, %v590
  %592 = vmatmul.bf16.gmra.mxu0 %v402
  %v593 = vpop.f32.mrf.mxu0
  %v594 = vadd.f32 %v456, %v593
  %v595 = vpop.f32.mrf.mxu0
  %v596 = vadd.f32 %v456, %v595
  %597 = vmatmul.bf16.gmra.mxu0 %v404
  %v598 = vpop.f32.mrf.mxu0
  %v599 = vadd.f32 %v456, %v598
  %v600 = vpop.f32.mrf.mxu0
  %v601 = vadd.f32 %v456, %v600
  %602 = vmatmul.bf16.gmra.mxu0 %v406
  %v603 = vpop.f32.mrf.mxu0
  %v604 = vadd.f32 %v456, %v603
  %v605 = vpop.f32.mrf.mxu0
  %v606 = vadd.f32 %v456, %v605
  %607 = vmatmul.bf16.gmra.mxu0 %v408
  %v608 = vpop.f32.mrf.mxu0
  %v609 = vadd.f32 %v456, %v608
  %v610 = vpop.f32.mrf.mxu0
  %v611 = vadd.f32 %v456, %v610
  %612 = vmatmul.bf16.gmra.mxu0 %v410
  %v613 = vpop.f32.mrf.mxu0
  %v614 = vadd.f32 %v456, %v613
  %v615 = vpop.f32.mrf.mxu0
  %v616 = vadd.f32 %v456, %v615
  %617 = vmatmul.bf16.gmra.mxu0 %v412
  %v618 = vpop.f32.mrf.mxu0
  %v619 = vadd.f32 %v456, %v618
  %v620 = vpop.f32.mrf.mxu0
  %v621 = vadd.f32 %v456, %v620
  %622 = vmatmul.bf16.gmra.mxu0 %v414
  %v623 = vpop.f32.mrf.mxu0
  %v624 = vadd.f32 %v456, %v623
  %v625 = vpop.f32.mrf.mxu0
  %v626 = vadd.f32 %v456, %v625
  %627 = vmatmul.bf16.gmra.mxu0 %v416
  %v628 = vpop.f32.mrf.mxu0
  %v629 = vadd.f32 %v456, %v628
  %v630 = vpop.f32.mrf.mxu0
  %v631 = vadd.f32 %v456, %v630
  %632 = vmatmul.bf16.gmra.mxu0 %v418
  %v633 = vpop.f32.mrf.mxu0
  %v634 = vadd.f32 %v456, %v633
  %v635 = vpop.f32.mrf.mxu0
  %v636 = vadd.f32 %v456, %v635
  %637 = vmatmul.bf16.gmra.mxu0 %v420
  %v638 = vpop.f32.mrf.mxu0
  %v639 = vadd.f32 %v456, %v638
  %v640 = vpop.f32.mrf.mxu0
  %v641 = vadd.f32 %v456, %v640
  %642 = vdwg.mxu0
  %643 = vmatpush.bf16.msra.mxu0 %v537
  %644 = vmatpush.bf16.msra.mxu0 %v536
  %645 = vmatpush.bf16.msra.mxu0 %v535
  %646 = vmatpush.bf16.msra.mxu0 %v534
  %647 = vmatpush.bf16.msra.mxu0 %v533
  %648 = vmatpush.bf16.msra.mxu0 %v532
  %649 = vmatpush.bf16.msra.mxu0 %v531
  %650 = vmatpush.bf16.msra.mxu0 %v530
  %651 = vmatmul.bf16.gmra.mxu0 %v391
  %v652 = vpop.f32.mrf.mxu0
  %v653 = vadd.f32 %v564, %v652
  %v654 = vpop.f32.mrf.mxu0
  %v655 = vadd.f32 %v566, %v654
  %656 = vmatmul.bf16.gmra.mxu0 %v393
  %v657 = vpop.f32.mrf.mxu0
  %v658 = vadd.f32 %v569, %v657
  %v659 = vpop.f32.mrf.mxu0
  %v660 = vadd.f32 %v571, %v659
  %661 = vmatmul.bf16.gmra.mxu0 %v395
  %v662 = vpop.f32.mrf.mxu0
  %v663 = vadd.f32 %v574, %v662
  %v664 = vpop.f32.mrf.mxu0
  %v665 = vadd.f32 %v576, %v664
  %666 = vmatmul.bf16.gmra.mxu0 %v397
  %v667 = vpop.f32.mrf.mxu0
  %v668 = vadd.f32 %v579, %v667
  %v669 = vpop.f32.mrf.mxu0
  %v670 = vadd.f32 %v581, %v669
  %671 = vmatmul.bf16.gmra.mxu0 %v399
  %v672 = vpop.f32.mrf.mxu0
  %v673 = vadd.f32 %v584, %v672
  %v674 = vpop.f32.mrf.mxu0
  %v675 = vadd.f32 %v586, %v674
  %676 = vmatmul.bf16.gmra.mxu0 %v401
  %v677 = vpop.f32.mrf.mxu0
  %v678 = vadd.f32 %v589, %v677
  %v679 = vpop.f32.mrf.mxu0
  %v680 = vadd.f32 %v591, %v679
  %681 = vmatmul.bf16.gmra.mxu0 %v403
  %v682 = vpop.f32.mrf.mxu0
  %v683 = vadd.f32 %v594, %v682
  %v684 = vpop.f32.mrf.mxu0
  %v685 = vadd.f32 %v596, %v684
  %686 = vmatmul.bf16.gmra.mxu0 %v405
  %v687 = vpop.f32.mrf.mxu0
  %v688 = vadd.f32 %v599, %v687
  %v689 = vpop.f32.mrf.mxu0
  %v690 = vadd.f32 %v601, %v689
  %691 = vmatmul.bf16.gmra.mxu0 %v407
  %v692 = vpop.f32.mrf.mxu0
  %v693 = vadd.f32 %v604, %v692
  %v694 = vpop.f32.mrf.mxu0
  %v695 = vadd.f32 %v606, %v694
  %696 = vmatmul.bf16.gmra.mxu0 %v409
  %v697 = vpop.f32.mrf.mxu0
  %v698 = vadd.f32 %v609, %v697
  %v699 = vpop.f32.mrf.mxu0
  %v700 = vadd.f32 %v611, %v699
  %701 = vmatmul.bf16.gmra.mxu0 %v411
  %v702 = vpop.f32.mrf.mxu0
  %v703 = vadd.f32 %v614, %v702
  %v704 = vpop.f32.mrf.mxu0
  %v705 = vadd.f32 %v616, %v704
  %706 = vmatmul.bf16.gmra.mxu0 %v413
  %v707 = vpop.f32.mrf.mxu0
  %v708 = vadd.f32 %v619, %v707
  %v709 = vpop.f32.mrf.mxu0
  %v710 = vadd.f32 %v621, %v709
  %711 = vmatmul.bf16.gmra.mxu0 %v415
  %v712 = vpop.f32.mrf.mxu0
  %v713 = vadd.f32 %v624, %v712
  %v714 = vpop.f32.mrf.mxu0
  %v715 = vadd.f32 %v626, %v714
  %716 = vmatmul.bf16.gmra.mxu0 %v417
  %v717 = vpop.f32.mrf.mxu0
  %v718 = vadd.f32 %v629, %v717
  %v719 = vpop.f32.mrf.mxu0
  %v720 = vadd.f32 %v631, %v719
  %721 = vmatmul.bf16.gmra.mxu0 %v419
  %v722 = vpop.f32.mrf.mxu0
  %v723 = vadd.f32 %v634, %v722
  %v724 = vpop.f32.mrf.mxu0
  %v725 = vadd.f32 %v636, %v724
  %726 = vmatmul.bf16.gmra.mxu0 %v421
  %v727 = vpop.f32.mrf.mxu0
  %v728 = vadd.f32 %v639, %v727
  %v729 = vpop.f32.mrf.mxu0
  %v730 = vadd.f32 %v641, %v729
  %731 = vdwg.mxu0
  %v732 = vmax.f32 %v653, 0.0
  %v733 = vmax.f32 %v655, 0.0
  %v734 = vmax.f32 %v658, 0.0
  %v735 = vmax.f32 %v660, 0.0
  %v736 = vmax.f32 %v663, 0.0
  %v737 = vmax.f32 %v665, 0.0
  %v738 = vmax.f32 %v668, 0.0
  %v739 = vmax.f32 %v670, 0.0
  %v740 = vmax.f32 %v673, 0.0
  %v741 = vmax.f32 %v675, 0.0
  %v742 = vmax.f32 %v678, 0.0
  %v743 = vmax.f32 %v680, 0.0
  %v744 = vmax.f32 %v683, 0.0
  %v745 = vmax.f32 %v685, 0.0
  %v746 = vmax.f32 %v688, 0.0
  %v747 = vmax.f32 %v690, 0.0
  %v748 = vmax.f32 %v693, 0.0
  %v749 = vmax.f32 %v695, 0.0
  %v750 = vmax.f32 %v698, 0.0
  %v751 = vmax.f32 %v700, 0.0
  %v752 = vmax.f32 %v703, 0.0
  %v753 = vmax.f32 %v705, 0.0
  %v754 = vmax.f32 %v708, 0.0
  %v755 = vmax.f32 %v710, 0.0
  %v756 = vmax.f32 %v713, 0.0
  %v757 = vmax.f32 %v715, 0.0
  %v758 = vmax.f32 %v718, 0.0
  %v759 = vmax.f32 %v720, 0.0
  %v760 = vmax.f32 %v723, 0.0
  %v761 = vmax.f32 %v725, 0.0
  %v762 = vmax.f32 %v728, 0.0
  %v763 = vmax.f32 %v730, 0.0
  %v764 = vpack.c.bf16 %v732, %v732
  %v765 = vpack.c.bf16 %v733, %v733
  %v766 = vpack.c.bf16 %v734, %v734
  %v767 = vpack.c.bf16 %v735, %v735
  %v768 = vpack.c.bf16 %v736, %v736
  %v769 = vpack.c.bf16 %v737, %v737
  %v770 = vpack.c.bf16 %v738, %v738
  %v771 = vpack.c.bf16 %v739, %v739
  %v772 = vpack.c.bf16 %v740, %v740
  %v773 = vpack.c.bf16 %v741, %v741
  %v774 = vpack.c.bf16 %v742, %v742
  %v775 = vpack.c.bf16 %v743, %v743
  %v776 = vpack.c.bf16 %v744, %v744
  %v777 = vpack.c.bf16 %v745, %v745
  %v778 = vpack.c.bf16 %v746, %v746
  %v779 = vpack.c.bf16 %v747, %v747
  %v780 = vpack.c.bf16 %v748, %v748
  %v781 = vpack.c.bf16 %v749, %v749
  %v782 = vpack.c.bf16 %v750, %v750
  %v783 = vpack.c.bf16 %v751, %v751
  %v784 = vpack.c.bf16 %v752, %v752
  %v785 = vpack.c.bf16 %v753, %v753
  %v786 = vpack.c.bf16 %v754, %v754
  %v787 = vpack.c.bf16 %v755, %v755
  %v788 = vpack.c.bf16 %v756, %v756
  %v789 = vpack.c.bf16 %v757, %v757
  %v790 = vpack.c.bf16 %v758, %v758
  %v791 = vpack.c.bf16 %v759, %v759
  %v792 = vpack.c.bf16 %v760, %v760
  %v793 = vpack.c.bf16 %v761, %v761
  %v794 = vpack.c.bf16 %v762, %v762
  %v795 = vpack.c.bf16 %v763, %v763
  %796 = vst [vmem:[%s5] sm:$0xf] %v764
  %797 = vst [vmem:[%s5 + $0x4] sm:$0xf] %v765
  %798 = vst [vmem:[%s5 + $0x8] sm:$0xf] %v766
  %799 = vst [vmem:[%s5 + $0xc] sm:$0xf] %v767
  %800 = vst [vmem:[%s5 + $0x10] sm:$0xf] %v768
  %801 = vst [vmem:[%s5 + $0x14] sm:$0xf] %v769
  %802 = vst [vmem:[%s5 + $0x18] sm:$0xf] %v770
  %803 = vst [vmem:[%s5 + $0x1c] sm:$0xf] %v771
  %804 = vst [vmem:[%s5 + $0x20] sm:$0xf] %v772
  %805 = vst [vmem:[%s5 + $0x24] sm:$0xf] %v773
  %806 = vst [vmem:[%s5 + $0x28] sm:$0xf] %v774
  %807 = vst [vmem:[%s5 + $0x2c] sm:$0xf] %v775
  %808 = vst [vmem:[%s5 + $0x30] sm:$0xf] %v776
  %809 = vst [vmem:[%s5 + $0x34] sm:$0xf] %v777
  %810 = vst [vmem:[%s5 + $0x38] sm:$0xf] %v778
  %811 = vst [vmem:[%s5 + $0x3c] sm:$0xf] %v779
  %812 = vst [vmem:[%s5 + $0x40] sm:$0xf] %v780
  %813 = vst [vmem:[%s5 + $0x44] sm:$0xf] %v781
  %814 = vst [vmem:[%s5 + $0x48] sm:$0xf] %v782
  %815 = vst [vmem:[%s5 + $0x4c] sm:$0xf] %v783
  %816 = vst [vmem:[%s5 + $0x50] sm:$0xf] %v784
  %817 = vst [vmem:[%s5 + $0x54] sm:$0xf] %v785
  %818 = vst [vmem:[%s5 + $0x58] sm:$0xf] %v786
  %819 = vst [vmem:[%s5 + $0x5c] sm:$0xf] %v787
  %820 = vst [vmem:[%s5 + $0x60] sm:$0xf] %v788
  %821 = vst [vmem:[%s5 + $0x64] sm:$0xf] %v789
  %822 = vst [vmem:[%s5 + $0x68] sm:$0xf] %v790
  %823 = vst [vmem:[%s5 + $0x6c] sm:$0xf] %v791
  %824 = vst [vmem:[%s5 + $0x70] sm:$0xf] %v792
  %825 = vst [vmem:[%s5 + $0x74] sm:$0xf] %v793
  %826 = vst [vmem:[%s5 + $0x78] sm:$0xf] %v794
  %827 = vst [vmem:[%s5 + $0x7c] sm:$0xf] %v795
  // Predicated region
  $region22: #{mlp_forward.1} parent=0 // pred_check
    _
  $region23: #{mlp_forward.1} parent=0 // pred_check_branch
    %829 = sbr.rel (0) target = $region25
  $region24: #{mlp_forward.1} parent=0 // pred_region
    _
  $region25: #{mlp_forward.1} parent=0 // pred_fallthru
    _
  // Predicated region
  $region26: #{mlp_forward.1} parent=0 // pred_check
    _
  $region27: #{mlp_forward.1} parent=0 // pred_check_branch
    %831 = sbr.rel (0) target = $region29
  $region28: #{mlp_forward.1} parent=0 // pred_region
    _
  $region29: #{mlp_forward.1} parent=0 // pred_fallthru
    _

</llo_original>
